<compile_context>
chip_gen: v7x
topology: tpu7x:2x2x1
jax: 0.10.0
libtpu: 0.0.40
codegen_flags: <defaults>
</compile_context>

<pallas_src>
import jax
import jax.numpy as jnp
from jax import lax
from jax.experimental import pallas as pl
from jax.experimental.pallas import tpu as pltpu

_LANE = 128
_SUB = 8


def _select_block_config():
    """Pick (block_rows_cap, vmem_limit_bytes) for the local TPU generation."""
    try:
        vmem_cap = int(pltpu.get_tpu_info().vmem_capacity_bytes)
    except Exception:
        vmem_cap = 64 * 1024 * 1024  # conservative (v7x-sized) fallback
    if vmem_cap >= 100 * 1024 * 1024:
        # v5e / v6e: 128 MiB physical VMEM -> 4 MiB per input buffer per step.
        return 8192, 64 * 1024 * 1024
    # v7x-class: 64 MiB physical VMEM -> 2 MiB buffers, <= 40 MiB scoped.
    return 4096, 40 * 1024 * 1024


def _make_kernel(block_rows: int, rows_total: int, infinitesimal: float,
                 mask_last: bool):
    """Per-block kernel: emit one (8,128) partial-sum tile per grid step."""
    groups = block_rows // _SUB

    def _reduce_to_tile(x):
        # (block_rows, 128) -> (groups, 8, 128) splits only the leading
        # (sublane-stacked) axis, so it is layout preserving; the sums over
        # leading axes are pure-VPU vreg adds.  A 4-way split of the leading
        # axis gives independent accumulator chains before a final combine.
        x = x.reshape(groups, _SUB, _LANE)
        if groups % 4 == 0 and groups >= 8:
            x = x.reshape(4, groups // 4, _SUB, _LANE)
            return x.sum(axis=1).sum(axis=0)
        return x.sum(axis=0)

    def kernel(p_ref, a_ref, o_ref):
        eps = jnp.float32(infinitesimal)
        p = p_ref[...].astype(jnp.float32)
        a = a_ref[...].astype(jnp.float32)

        diff = p - a
        # PyTorch: absolute_error[absolute_error == 0] = infinitesimal
        diff = jnp.where(diff == 0.0, eps, diff)
        den = a + eps

        if mask_last:
            i = pl.program_id(0)
            last = pl.num_programs(0) - 1

            @pl.when(i == last)
            def _():
                # Only the last (partial) block contains Pallas-padded,
                # undefined rows.  Mask BEFORE the divide (numerator -> 0,
                # denominator -> 1) so NaN/Inf in padded data cannot leak
                # into the partial sum.  Row counts fit int32 for any
                # realistic tensor.
                valid_rows = rows_total - i * block_rows
                row = lax.broadcasted_iota(jnp.int32, (block_rows, _LANE), 0)
                valid = row < valid_rows
                num = jnp.where(valid, diff, jnp.float32(0.0))
                dm = jnp.where(valid, den, jnp.float32(1.0))
                o_ref[...] = _reduce_to_tile(jnp.abs(num / dm))

            @pl.when(i != last)
            def _():
                # Exact division for parity with the reference.
                o_ref[...] = _reduce_to_tile(jnp.abs(diff / den))
        else:
            o_ref[...] = _reduce_to_tile(jnp.abs(diff / den))

    return kernel


def _jax_rel_error_sum(p, a, eps):
    # Plain-JAX fallback path for tiny tails / tiny inputs.
    p = p.astype(jnp.float32)
    a = a.astype(jnp.float32)
    d = p - a
    d = jnp.where(d == 0.0, eps, d)
    return jnp.sum(jnp.abs(d / (a + eps)))


def relative_error_loss(predicted, actual, infinitesimal: float = 1e-8):
    """Pallas TPU implementation of RelativeErrorLoss.forward."""
    assert predicted.shape == actual.shape
    total = int(predicted.size)
    eps = jnp.float32(infinitesimal)

    # Row-major flatten of a contiguous array is free (no copy).
    p_flat = predicted.reshape(-1)
    a_flat = actual.reshape(-1)

    lane_bulk = (total // _LANE) * _LANE
    lane_tail = total - lane_bulk            # < 128 leftover elements
    rows = lane_bulk // _LANE

    total_sum = jnp.float32(0.0)

    if lane_tail:
        # Rare path: element count not a multiple of 128.  The <128-element
        # tail is folded in plain JAX; only in this exotic-shape case does
        # the bulk below need a slice (one extra copy).
        total_sum = total_sum + _jax_rel_error_sum(
            p_flat[lane_bulk:], a_flat[lane_bulk:], eps)

    if rows:
        if rows < _SUB:
            # Tiny input (< 1024 elements): not worth a kernel launch.
            pb = p_flat[:lane_bulk] if lane_tail else p_flat
            ab = a_flat[:lane_bulk] if lane_tail else a_flat
            total_sum = total_sum + _jax_rel_error_sum(pb, ab, eps)
        else:
            block_cap, vmem_limit = _select_block_config()
            # block_rows is a multiple of 8 (so the in-kernel (8,128) tiling
            # holds); any ragged rows go to a padded + masked last block.
            block_rows = min(block_cap, (rows // _SUB) * _SUB)
            n_blocks = -(-rows // block_rows)
            mask_last = (rows % block_rows) != 0

            # Reshape of the full flat array (total % 128 == 0) is free.
            p2 = (p_flat[:lane_bulk] if lane_tail else p_flat).reshape(
                rows, _LANE)
            a2 = (a_flat[:lane_bulk] if lane_tail else a_flat).reshape(
                rows, _LANE)

            kernel = _make_kernel(block_rows, rows, infinitesimal, mask_last)

            partials = pl.pallas_call(
                kernel,
                out_shape=jax.ShapeDtypeStruct((n_blocks * _SUB, _LANE),
                                               jnp.float32),
                grid_spec=pltpu.PrefetchScalarGridSpec(
                    num_scalar_prefetch=0,
                    grid=(n_blocks,),
                    in_specs=[
                        pl.BlockSpec((block_rows, _LANE), lambda i: (i, 0)),
                        pl.BlockSpec((block_rows, _LANE), lambda i: (i, 0)),
                    ],
                    out_specs=pl.BlockSpec((_SUB, _LANE), lambda i: (i, 0)),
                ),
                compiler_params=pltpu.CompilerParams(
                    # Pure map over blocks (no carried accumulator) ->
                    # "parallel" lets v7x megacore shard the stream across
                    # both TensorCores; harmless on single-TC v5e/v6e.
                    dimension_semantics=("parallel",),
                    vmem_limit_bytes=vmem_limit,
                ),
            )(p2, a2)

            total_sum = total_sum + jnp.sum(partials)

    return total_sum / jnp.float32(total)


def _reference(predicted, actual, infinitesimal=1e-8):
    diff = predicted.astype(jnp.float32) - actual.astype(jnp.float32)
    diff = jnp.where(diff == 0.0, infinitesimal, diff)
    rel = jnp.abs(diff / (actual.astype(jnp.float32) + infinitesimal))
    return jnp.mean(rel)


if __name__ == "__main__":
    key = jax.random.PRNGKey(0)
    k1, k2 = jax.random.split(key)

    # NCHW inputs, small shapes.
    shape = (2, 4, 16, 16)
    predicted = jax.random.normal(k1, shape, dtype=jnp.float32)
    actual = jax.random.normal(k2, shape, dtype=jnp.float32)
    # Ensure some exact-zero differences exercise the `== 0` branch.
    predicted = predicted.at[0, 0, 0, :4].set(actual[0, 0, 0, :4])

    loss = relative_error_loss(predicted, actual)
    jax.block_until_ready(loss)

    ref = _reference(predicted, actual)
    assert jnp.allclose(loss, ref, rtol=1e-5, atol=1e-6), (loss, ref)

    print("KERNEL_OK")
</pallas_src>

<mosaic_0001>
module attributes {stable_mosaic.version = 11 : i64} {
  func.func @kernel(%arg0: i32, %arg1: memref<16x128xf32, #tpu.memory_space<vmem>>, %arg2: memref<16x128xf32, #tpu.memory_space<vmem>>, %arg3: memref<8x128xf32, #tpu.memory_space<vmem>>) attributes {dimension_semantics = [#tpu.dimension_semantics<parallel>], iteration_bounds = array<i64: 1>, scalar_prefetch = 0 : i64, scratch_operands = 0 : i64, tpu.core_type = #tpu.core_type<tc>, window_params = [{transform_indices = @transform_0, window_bounds = array<i64: 16, 128>}, {transform_indices = @transform_1, window_bounds = array<i64: 16, 128>}, {transform_indices = @transform_2, window_bounds = array<i64: 8, 128>}]} {
    %c0 = arith.constant 0 : index
    %c0_0 = arith.constant 0 : index
    %0 = vector.load %arg1[%c0, %c0_0] : memref<16x128xf32, #tpu.memory_space<vmem>>, vector<16x128xf32>
    %c0_1 = arith.constant 0 : index
    %c0_2 = arith.constant 0 : index
    %1 = vector.load %arg2[%c0_1, %c0_2] : memref<16x128xf32, #tpu.memory_space<vmem>>, vector<16x128xf32>
    %2 = arith.subf %0, %1 : vector<16x128xf32>
    %cst = arith.constant 0.000000e+00 : f32
    %3 = vector.broadcast %cst : f32 to vector<16x128xf32>
    %4 = arith.cmpf oeq, %2, %3 : vector<16x128xf32>
    %cst_3 = arith.constant 9.99999993E-9 : f32
    %5 = vector.broadcast %cst_3 : f32 to vector<16x128xf32>
    %6 = arith.select %4, %5, %2 : vector<16x128xi1>, vector<16x128xf32>
    %cst_4 = arith.constant 9.99999993E-9 : f32
    %7 = vector.broadcast %cst_4 : f32 to vector<16x128xf32>
    %8 = arith.addf %1, %7 : vector<16x128xf32>
    %9 = arith.divf %6, %8 : vector<16x128xf32>
    %10 = math.absf %9 : vector<16x128xf32>
    %11 = vector.shape_cast %10 : vector<16x128xf32> to vector<2x8x128xf32>
    %cst_5 = arith.constant dense<0.000000e+00> : vector<8x128xf32>
    %12 = vector.multi_reduction <add>, %11, %cst_5 [0] : vector<2x8x128xf32> to vector<8x128xf32>
    %c0_6 = arith.constant 0 : index
    %c0_7 = arith.constant 0 : index
    %13 = vector.load %arg3[%c0_6, %c0_7] : memref<8x128xf32, #tpu.memory_space<vmem>>, vector<8x128xf32>
    tpu.vector_store %arg3[%c0_6, %c0_7], %12 {strides = array<i32>} : memref<8x128xf32, #tpu.memory_space<vmem>>, vector<8x128xf32>,
    return
  }
  func.func @transform_0(%arg0: i32) -> (i32, i32) {
    %c0_i32 = arith.constant 0 : i32
    %c0_i32_0 = arith.constant 0 : i32
    return %arg0, %c0_i32 : i32, i32
  }
  func.func @transform_1(%arg0: i32) -> (i32, i32) {
    %c0_i32 = arith.constant 0 : i32
    %c0_i32_0 = arith.constant 0 : i32
    return %arg0, %c0_i32 : i32, i32
  }
  func.func @transform_2(%arg0: i32) -> (i32, i32) {
    %c0_i32 = arith.constant 0 : i32
    %c0_i32_0 = arith.constant 0 : i32
    return %arg0, %c0_i32 : i32, i32
  }
}

</mosaic_0001>

<llo_original>
// kernel: tpu_custom_call.1
$region0: #{tpu_custom_call.1}
  #allocation0 [shape = 'u32[]', space=smem, size = 0x4, offset = 0x4, fixed_abs, tag = 'smem constant byte address 0x4 - core index']
  #allocation1 [shape = 'u32[144,128]{1,0:T(1,128)}', space=vmem, size = 0x12000, scoped, tag = 'internal scratch']
  %s0 = inlined_call_operand.hbm [shape: f32[16,128], index: 0, kind: input, shape index: {}]
  %s1 = inlined_call_operand.hbm [shape: f32[16,128], index: 1, kind: input, shape index: {}]
  %s2 = inlined_call_operand.hbm [shape: f32[8,128], index: 2, kind: output, shape index: {}]
  %s3 = sld [smem:[#allocation0]]
  $region26: #{tpu_custom_call.1} parent=0
    _
  %s5 = ssub.s32 1, %s3
  %s6 = scalar_select 0, %s5, %s3
  $region1: #{tpu_custom_call.1} parent=0
    #allocation2 [shape = 'u8[8192]{0}', space=vmem, size = 0x2000, scoped, tag = 'input window, operand 0, single buffered']
    #allocation3 [shape = 's32[1]{0}', space=sflag, size = 0x4, scoped, tag = 'scoped memory for tpu_custom_call.1']
    #allocation4 [shape = 's32[1]{0}', space=sflag, size = 0x4, scoped, tag = 'scoped memory for tpu_custom_call.1']
    #allocation5 [shape = 'u8[8192]{0}', space=vmem, size = 0x2000, scoped, tag = 'input window, operand 1, single buffered']
    #allocation6 [shape = 's32[1]{0}', space=sflag, size = 0x4, scoped, tag = 'scoped memory for tpu_custom_call.1']
    #allocation7 [shape = 'u8[4096]{0}', space=vmem, size = 0x1000, scoped, tag = 'output window, operand 0, single buffered']
    %7 = vsyncpa [#allocation3], 0
    %8 = vsyncpa [#allocation6], 0
    %9 = vsyncpa [#allocation4], 0
    // Predicated region
    $region2: #{tpu_custom_call.1} parent=1 // pred_check
      _
    $region3: #{tpu_custom_call.1} parent=1 // pred_check_branch
      %11 = sbr.rel (0) target = $region5
    $region4: #{tpu_custom_call.1} parent=1 // pred_region
      %s13 = ssub.s32 256, 256
      %14 = vsyncadd [#allocation3], %s13
      %s15 = sshll.u32 [#allocation2], 4
      %s16 = int_to_ptr.vmem [resolvable:$true] %s15
      %21 = dma.hbm_to_vmem [thread:$0]  %s0, 256, %s16, [#allocation3], 128, 128, 8
    $region5: #{tpu_custom_call.1} parent=1 // pred_fallthru
      _
    // Predicated region
    $region6: #{tpu_custom_call.1} parent=1 // pred_check
      _
    $region7: #{tpu_custom_call.1} parent=1 // pred_check_branch
      %23 = sbr.rel (0) target = $region9
    $region8: #{tpu_custom_call.1} parent=1 // pred_region
      %s25 = ssub.s32 256, 256
      %26 = vsyncadd [#allocation6], %s25
      %s27 = sshll.u32 [#allocation5], 4
      %s28 = int_to_ptr.vmem [resolvable:$true] %s27
      %33 = dma.hbm_to_vmem [thread:$0]  %s1, 256, %s28, [#allocation6], 128, 128, 8
    $region9: #{tpu_custom_call.1} parent=1 // pred_fallthru
      _
    // Predicated region
    $region10: #{tpu_custom_call.1} parent=1 // pred_check
      _
    $region11: #{tpu_custom_call.1} parent=1 // pred_check_branch
      %35 = sbr.rel (0) target = $region13
    $region12: #{tpu_custom_call.1} parent=1 // pred_region
      %36 = dma.done [#allocation3], 256
    $region13: #{tpu_custom_call.1} parent=1 // pred_fallthru
      _
    // Predicated region
    $region14: #{tpu_custom_call.1} parent=1 // pred_check
      _
    $region15: #{tpu_custom_call.1} parent=1 // pred_check_branch
      %38 = sbr.rel (0) target = $region17
    $region16: #{tpu_custom_call.1} parent=1 // pred_region
      %39 = dma.done [#allocation6], 256
    $region17: #{tpu_custom_call.1} parent=1 // pred_fallthru
      _
    %v40 = vld [vmem:[#allocation2] sm:$0xff]
    %v41 = vld [vmem:[#allocation2 + $0x8] sm:$0xff]
    %v42 = vld [vmem:[#allocation5] sm:$0xff]
    %v43 = vld [vmem:[#allocation5 + $0x8] sm:$0xff]
    %v44 = vsub.f32 %v40, %v42
    %v45 = vsub.f32 %v41, %v43
    %vm46 = vcmp.eq.f32.partialorder %v44, 0.0
    %vm47 = vcmp.eq.f32.partialorder %v45, 0.0
    %v48 = vsel %vm46, 1e-08, %v44
    %v49 = vsel %vm47, 1e-08, %v45
    %v50 = vadd.f32 %v42, 1e-08
    %v51 = vadd.f32 %v43, 1e-08
    %v52 = vrcp.pop %v50
    %v53 = vmul.f32 %v48, %v52
    %v54 = vrcp.pop %v51
    %v55 = vmul.f32 %v49, %v54
    %v56 = vand.u32 2147483647, %v53
    %v57 = vand.u32 2147483647, %v55
    %v58 = vadd.f32 %v56, %v57
    %59 = vst [vmem:[#allocation7] sm:$0xff] %v58
    // Predicated region
    $region18: #{tpu_custom_call.1} parent=1 // pred_check
      _
    $region19: #{tpu_custom_call.1} parent=1 // pred_check_branch
      %61 = sbr.rel (0) target = $region21
    $region20: #{tpu_custom_call.1} parent=1 // pred_region
      %s63 = ssub.s32 128, 128
      %64 = vsyncadd [#allocation4], %s63
      %s66 = sshll.u32 [#allocation7], 4
      %s67 = int_to_ptr.vmem [resolvable:$true] %s66
      %69 = dma.vmem_to_hbm [thread:$0]  %s67, 128, %s2, [#allocation4]
    $region21: #{tpu_custom_call.1} parent=1 // pred_fallthru
      _
    // Predicated region
    $region22: #{tpu_custom_call.1} parent=1 // pred_check
      _
    $region23: #{tpu_custom_call.1} parent=1 // pred_check_branch
      %71 = sbr.rel (0) target = $region25
    $region24: #{tpu_custom_call.1} parent=1 // pred_region
      %72 = dma.done [#allocation4], 128
    $region25: #{tpu_custom_call.1} parent=1 // pred_fallthru
      _
    %73 = vsyncpa [#allocation3], 1
    %74 = vsyncpa [#allocation6], 1
    %75 = vsyncpa [#allocation4], 1

</llo_original>
